<compile_context>
chip_gen: v7x
topology: tpu7x:2x2x1
jax: 0.10.0
libtpu: 0.0.40
codegen_flags: <defaults>
</compile_context>

<pallas_src>
import functools
import math

import jax
import jax.numpy as jnp
import numpy as np
from jax.experimental import pallas as pl
from jax.experimental.pallas import tpu as pltpu


def _round_up(n, m):
    return ((n + m - 1) // m) * m


def _cdiv(a, b):
    return -(-a // b)


def critic_kernel(x_ref, wc_ref, bc_ref, wo_ref, bo_ref, o_ref, *, matmul_dtype):
    """One batch tile of the fused critic MLP.

    x_ref : (TB, IN)   f32 (cast to `matmul_dtype` in-kernel; no wrapper pre-cast)
    wc_ref: (IN, 2H)   matmul_dtype   fused [W1 | W1@W2]
    bc_ref: (1, 2H)    f32            fused [b1 | b1@W2 + b2]
    wo_ref: (1, 2H)    f32            [wo^T | wo^T]
    bo_ref: (1, 1)     f32
    o_ref : (1, 1, TB) f32            lane-dense output row for this tile
    """
    x = x_ref[...].astype(matmul_dtype)
    # Fused lin1+lin2: a single MXU pass (f32 accumulate); bias + ReLU in f32.
    h = jnp.dot(x, wc_ref[...], preferred_element_type=jnp.float32) + bc_ref[...]
    s = jnp.maximum(h, 0.0)                       # [relu(h1) | relu(h2)]  (TB, 2H)
    # Output layer as wo_cat (1,2H) . s^T: same A @ B^T pattern as attention
    # scores, result comes out of the MXU lane-dense as a (1, TB) row, so the
    # store path is unmasked full-lane vst's rather than TB/8 masked column
    # stores.
    y = jax.lax.dot_general(wo_ref[...], s, (((1,), (1,)), ((), ())),
                            preferred_element_type=jnp.float32)
    o_ref[...] = (y + bo_ref[...]).reshape(o_ref.shape)


def critic_forward(x, params, *, block_b=4096, matmul_dtype=jnp.float32):
    """x: (B, in_size) f32.  Returns (B, 1) f32."""
    w1, b1, w2, b2, wo, bo = (params["w1"], params["b1"], params["w2"],
                              params["b2"], params["wo"], params["bo"])
    B, in_size = x.shape
    hidden = w1.shape[1]
    assert block_b % 8 == 0 and block_b >= 8, "block_b must be a positive multiple of 8"

    # --- Algebraic lin1+lin2 fusion, done in f32 BEFORE any low-precision cast.
    w1f = w1.astype(jnp.float32)
    w2f = w2.astype(jnp.float32)
    b1f = b1.reshape(1, hidden).astype(jnp.float32)
    b2f = b2.reshape(1, hidden).astype(jnp.float32)
    wc = jnp.concatenate([w1f, w1f @ w2f], axis=1)          # (IN, 2H)
    bc = jnp.concatenate([b1f, b1f @ w2f + b2f], axis=1)    # (1, 2H)
    wo_row = wo.reshape(1, hidden).astype(jnp.float32)
    wo_cat = jnp.concatenate([wo_row, wo_row], axis=1)      # (1, 2H)
    bo_f = bo.reshape(1, 1).astype(jnp.float32)
    # Only the tiny weight matrix is pre-cast; x itself stays f32 in HBM and is
    # cast (or not) inside the kernel, right before the dot.
    wc = wc.astype(matmul_dtype)

    # --- Batch tiling.  Pad at most 7 rows for sublane alignment (no copy when
    # B is already a multiple of 8, which is the common SAC case).
    B8 = _round_up(max(B, 1), 8)
    if B8 != B:
        x = jnp.pad(x, ((0, B8 - B), (0, 0)))
    tb = min(block_b, B8)
    if B8 > 256:
        # Ensure >= 2 grid steps so v7x's two TensorCores both get work under
        # dimension_semantics=("parallel",).  No effect on v5e/v6e (single TC).
        tb = min(tb, _round_up(_cdiv(B8, 2), 8))
    grid_b = _cdiv(B8, tb)   # last tile may be partial; Pallas masks the boundary

    def resident(a):  # whole (tiny) array, VMEM-resident across every grid step
        return pl.BlockSpec(a.shape, lambda i: (0, 0), memory_space=pltpu.VMEM)

    kernel = functools.partial(critic_kernel, matmul_dtype=matmul_dtype)
    out = pl.pallas_call(
        kernel,
        # Lane-dense output: one (1, tb) row per tile, reshaped/sliced below.
        out_shape=jax.ShapeDtypeStruct((grid_b, 1, tb), jnp.float32),
        grid=(grid_b,),
        in_specs=[
            pl.BlockSpec((tb, in_size), lambda i: (i, 0), memory_space=pltpu.VMEM),
            resident(wc), resident(bc), resident(wo_cat), resident(bo_f),
        ],
        out_specs=pl.BlockSpec((1, 1, tb), lambda i: (i, 0, 0),
                               memory_space=pltpu.VMEM),
        compiler_params=pltpu.CompilerParams(
            dimension_semantics=("parallel",),   # megacore-shard the batch on v7x
            vmem_limit_bytes=32 * 1024 * 1024,   # fits v5e/v6e/v7x budgets
        ),
    )(x, wc, bc, wo_cat, bo_f)
    return out.reshape(-1)[:B].reshape(B, 1)


def init_params(key, hidden_size, action_size, state_size):
    """Deterministic init mimicking PyTorch nn.Linear default U(-1/sqrt(fan_in), ...)."""
    in_size = action_size + state_size
    ks = jax.random.split(key, 6)

    def lin(kw, kb, fan_in, fan_out):
        bound = 1.0 / math.sqrt(fan_in)
        # stored transposed: (fan_in, fan_out)
        w = jax.random.uniform(kw, (fan_in, fan_out), jnp.float32, -bound, bound)
        b = jax.random.uniform(kb, (1, fan_out), jnp.float32, -bound, bound)
        return w, b

    w1, b1 = lin(ks[0], ks[1], in_size, hidden_size)
    w2, b2 = lin(ks[2], ks[3], hidden_size, hidden_size)
    wo, bo = lin(ks[4], ks[5], hidden_size, 1)
    return dict(w1=w1, b1=b1, w2=w2, b2=b2, wo=wo, bo=bo)


def reference_forward_f64(x, p):
    """Ground-truth forward in float64 on the host (numpy)."""
    xd = np.asarray(x, np.float64)
    w1 = np.asarray(p["w1"], np.float64); b1 = np.asarray(p["b1"], np.float64)
    w2 = np.asarray(p["w2"], np.float64); b2 = np.asarray(p["b2"], np.float64)
    wo = np.asarray(p["wo"], np.float64); bo = np.asarray(p["bo"], np.float64)
    h1 = xd @ w1 + b1
    a1 = np.maximum(h1, 0.0)
    h2 = h1 @ w2 + b2            # pre-ReLU h1 feeds lin2, as in the PyTorch code
    a2 = np.maximum(h2, 0.0)
    return (a2 + a1) @ wo + bo


if __name__ == "__main__":
    # TODO(synk): the module also constructs optim.Adam (training state); only the
    # forward pass is implemented here.
    hidden_size, action_size, state_size = 32, 4, 12
    in_size = action_size + state_size

    key = jax.random.PRNGKey(0)
    k_params, k_x, k_x2, k_x3 = jax.random.split(key, 4)
    params = init_params(k_params, hidden_size, action_size, state_size)

    TOL = dict(atol=3e-2, rtol=3e-2)

    # Small batch, single tile, default f32 compute path.
    x = jax.random.normal(k_x, (8, in_size), jnp.float32)
    ref = reference_forward_f64(x, params)
    out = jax.block_until_ready(critic_forward(x, params))
    assert out.shape == (8, 1), out.shape
    assert np.allclose(np.asarray(out, np.float64), ref, **TOL), \
        "f32-path mismatch vs float64 reference"

    # bf16 MXU-operand path (x cast in-kernel; weights fused in f32 first).
    out_bf16 = jax.block_until_ready(
        critic_forward(x, params, matmul_dtype=jnp.bfloat16))
    assert out_bf16.shape == (8, 1), out_bf16.shape
    assert np.allclose(np.asarray(out_bf16, np.float64), ref, **TOL), \
        "bf16-path mismatch vs float64 reference"

    # Multi-step grid with a ragged (partial) last tile: 200 rows, 64-row tiles.
    x2 = jax.random.normal(k_x2, (200, in_size), jnp.float32)
    ref2 = reference_forward_f64(x2, params)
    out2 = jax.block_until_ready(critic_forward(x2, params, block_b=64))
    assert out2.shape == (200, 1), out2.shape
    assert np.allclose(np.asarray(out2, np.float64), ref2, **TOL), \
        "ragged tiled-batch mismatch vs float64 reference"

    # Batch large enough that the tile auto-splits into >=2 grid steps (v7x path).
    x3 = jax.random.normal(k_x3, (1024, in_size), jnp.float32)
    ref3 = reference_forward_f64(x3, params)
    out3 = jax.block_until_ready(critic_forward(x3, params))
    assert out3.shape == (1024, 1), out3.shape
    assert np.allclose(np.asarray(out3, np.float64), ref3, **TOL), \
        "large-batch mismatch vs float64 reference"

    print("KERNEL_OK")
</pallas_src>

<mosaic_0001>
module attributes {stable_mosaic.version = 11 : i64} {
  func.func @critic_kernel(%arg0: i32, %arg1: memref<8x16xf32, #tpu.memory_space<vmem>>, %arg2: memref<16x64xf32, #tpu.memory_space<vmem>>, %arg3: memref<1x64xf32, #tpu.memory_space<vmem>>, %arg4: memref<1x64xf32, #tpu.memory_space<vmem>>, %arg5: memref<1x1xf32, #tpu.memory_space<vmem>>, %arg6: memref<1x1x8xf32, #tpu.memory_space<vmem>>) attributes {dimension_semantics = [#tpu.dimension_semantics<parallel>], iteration_bounds = array<i64: 1>, scalar_prefetch = 0 : i64, scratch_operands = 0 : i64, tpu.core_type = #tpu.core_type<tc>, window_params = [{transform_indices = @transform_0, window_bounds = array<i64: 8, 16>}, {pipeline_mode = #tpu.pipeline_mode<synchronous>, transform_indices = @transform_1, window_bounds = array<i64: 16, 64>}, {pipeline_mode = #tpu.pipeline_mode<synchronous>, transform_indices = @transform_2, window_bounds = array<i64: 1, 64>}, {pipeline_mode = #tpu.pipeline_mode<synchronous>, transform_indices = @transform_3, window_bounds = array<i64: 1, 64>}, {pipeline_mode = #tpu.pipeline_mode<synchronous>, transform_indices = @transform_4, window_bounds = array<i64: 1, 1>}, {transform_indices = @transform_5, window_bounds = array<i64: 1, 1, 8>}]} {
    %c0 = arith.constant 0 : index
    %c0_0 = arith.constant 0 : index
    %0 = vector.load %arg1[%c0, %c0_0] : memref<8x16xf32, #tpu.memory_space<vmem>>, vector<8x16xf32>
    %c0_1 = arith.constant 0 : index
    %c0_2 = arith.constant 0 : index
    %1 = vector.load %arg2[%c0_1, %c0_2] : memref<16x64xf32, #tpu.memory_space<vmem>>, vector<16x64xf32>
    %cst = arith.constant dense<0.000000e+00> : vector<8x64xf32>
    %2 = tpu.matmul %0, %1, %cst {dimension_numbers = #tpu.dot_dimension_numbers<[1], [0], [0], [1], [0, 0, 1, 1], [], []>} : vector<8x16xf32>, vector<16x64xf32>, vector<8x64xf32> -> vector<8x64xf32>
    %c0_3 = arith.constant 0 : index
    %c0_4 = arith.constant 0 : index
    %3 = vector.load %arg3[%c0_3, %c0_4] : memref<1x64xf32, #tpu.memory_space<vmem>>, vector<1x64xf32>
    %4 = vector.broadcast %3 : vector<1x64xf32> to vector<8x64xf32>
    %5 = arith.addf %2, %4 : vector<8x64xf32>
    %cst_5 = arith.constant 0.000000e+00 : f32
    %6 = vector.broadcast %cst_5 : f32 to vector<8x64xf32>
    %7 = arith.maximumf %5, %6 : vector<8x64xf32>
    %c0_6 = arith.constant 0 : index
    %c0_7 = arith.constant 0 : index
    %8 = vector.load %arg4[%c0_6, %c0_7] : memref<1x64xf32, #tpu.memory_space<vmem>>, vector<1x64xf32>
    %cst_8 = arith.constant dense<0.000000e+00> : vector<1x8xf32>
    %9 = tpu.matmul %8, %7, %cst_8 {dimension_numbers = #tpu.dot_dimension_numbers<[1], [1], [0], [0], [0, 0, 1, 0], [], []>} : vector<1x64xf32>, vector<8x64xf32>, vector<1x8xf32> -> vector<1x8xf32>
    %c0_9 = arith.constant 0 : index
    %c0_10 = arith.constant 0 : index
    %10 = vector.load %arg5[%c0_9, %c0_10] : memref<1x1xf32, #tpu.memory_space<vmem>>, vector<1x1xf32>
    %11 = vector.broadcast %10 : vector<1x1xf32> to vector<1x8xf32>
    %12 = arith.addf %9, %11 : vector<1x8xf32>
    %13 = vector.shape_cast %12 : vector<1x8xf32> to vector<1x1x8xf32>
    %c0_11 = arith.constant 0 : index
    %c0_12 = arith.constant 0 : index
    %c0_13 = arith.constant 0 : index
    %14 = vector.load %arg6[%c0_11, %c0_12, %c0_13] : memref<1x1x8xf32, #tpu.memory_space<vmem>>, vector<1x1x8xf32>
    tpu.vector_store %arg6[%c0_11, %c0_12, %c0_13], %13 {strides = array<i32>} : memref<1x1x8xf32, #tpu.memory_space<vmem>>, vector<1x1x8xf32>,
    return
  }
  func.func @transform_0(%arg0: i32) -> (i32, i32) {
    %c0_i32 = arith.constant 0 : i32
    %c0_i32_0 = arith.constant 0 : i32
    return %arg0, %c0_i32 : i32, i32
  }
  func.func @transform_1(%arg0: i32) -> (i32, i32) {
    %c0_i32 = arith.constant 0 : i32
    %c0_i32_0 = arith.constant 0 : i32
    %c0_i32_1 = arith.constant 0 : i32
    return %c0_i32, %c0_i32_0 : i32, i32
  }
  func.func @transform_2(%arg0: i32) -> (i32, i32) {
    %c0_i32 = arith.constant 0 : i32
    %c0_i32_0 = arith.constant 0 : i32
    %c0_i32_1 = arith.constant 0 : i32
    return %c0_i32, %c0_i32_0 : i32, i32
  }
  func.func @transform_3(%arg0: i32) -> (i32, i32) {
    %c0_i32 = arith.constant 0 : i32
    %c0_i32_0 = arith.constant 0 : i32
    %c0_i32_1 = arith.constant 0 : i32
    return %c0_i32, %c0_i32_0 : i32, i32
  }
  func.func @transform_4(%arg0: i32) -> (i32, i32) {
    %c0_i32 = arith.constant 0 : i32
    %c0_i32_0 = arith.constant 0 : i32
    %c0_i32_1 = arith.constant 0 : i32
    return %c0_i32, %c0_i32_0 : i32, i32
  }
  func.func @transform_5(%arg0: i32) -> (i32, i32, i32) {
    %c0_i32 = arith.constant 0 : i32
    %c0_i32_0 = arith.constant 0 : i32
    %c0_i32_1 = arith.constant 0 : i32
    return %arg0, %c0_i32, %c0_i32_0 : i32, i32, i32
  }
}

</mosaic_0001>

<llo_original>
// kernel: tpu_custom_call.1
$region0: #{tpu_custom_call.1}
  #allocation0 [shape = 'u32[]', space=smem, size = 0x4, offset = 0x4, fixed_abs, tag = 'smem constant byte address 0x4 - core index']
  #allocation1 [shape = 'u32[144,128]{1,0:T(1,128)}', space=vmem, size = 0x12000, scoped, tag = 'internal scratch']
  #allocation2 [shape = 'f32[1,1]{1,0:T(1,128)S(1)}', space=vmem, size = 0x200, scoped, tag = 'scoped memory for tpu_custom_call.1']
  %s0 = inlined_call_operand.hbm [shape: f32[8,16], index: 0, kind: input, shape index: {}]
  %s1 = inlined_call_operand.hbm [shape: f32[16,64], index: 1, kind: input, shape index: {}]
  %s2 = inlined_call_operand.vmem [shape: f32[1,64], index: 2, kind: input, shape index: {}]
  %s3 = inlined_call_operand.vmem [shape: f32[1,64], index: 3, kind: input, shape index: {}]
  %s4 = inlined_call_operand.<no memory space> [shape: f32[1,1], index: 4, kind: input, shape index: {}]
  %s5 = inlined_call_operand.hbm [shape: f32[1,1,8], index: 5, kind: output, shape index: {}]
  %s6 = sld [smem:[#allocation0]]
  $region38: #{tpu_custom_call.1} parent=0
    _
  %s8 = ssub.s32 1, %s6
  %s9 = scalar_select 0, %s8, %s6
  %v10 = vstv %s4
  %11 = vst [vmem:[#allocation2] sm:$0x1] %v10
  $region1: #{tpu_custom_call.1} parent=0
    #allocation3 [shape = 'u8[4096]{0}', space=vmem, size = 0x1000, scoped, tag = 'input window, operand 0, single buffered']
    #allocation4 [shape = 's32[1]{0}', space=sflag, size = 0x4, scoped, tag = 'scoped memory for tpu_custom_call.1']
    #allocation5 [shape = 's32[1]{0}', space=sflag, size = 0x4, scoped, tag = 'scoped memory for tpu_custom_call.1']
    #allocation6 [shape = 'u8[8192]{0}', space=vmem, size = 0x2000, scoped, tag = 'input window, operand 1, single buffered']
    #allocation7 [shape = 's32[1]{0}', space=sflag, size = 0x4, scoped, tag = 'scoped memory for tpu_custom_call.1']
    #allocation8 [shape = 'u8[512]{0}', space=vmem, size = 0x400, scoped, tag = 'output window, operand 0, single buffered']
    %12 = vsyncpa [#allocation4], 0
    %13 = vsyncpa [#allocation7], 0
    %14 = vsyncpa [#allocation5], 0
    // Predicated region
    $region2: #{tpu_custom_call.1} parent=1 // pred_check
      _
    $region3: #{tpu_custom_call.1} parent=1 // pred_check_branch
      %16 = sbr.rel (0) target = $region5
    $region4: #{tpu_custom_call.1} parent=1 // pred_region
      %s18 = ssub.s32 128, 128
      %19 = vsyncadd [#allocation4], %s18
      %s21 = sshll.u32 [#allocation3], 4
      %s22 = int_to_ptr.vmem [resolvable:$true] %s21
      %24 = dma.hbm_to_vmem [thread:$0]  %s0, 128, %s22, [#allocation4]
    $region5: #{tpu_custom_call.1} parent=1 // pred_fallthru
      _
    // Predicated region
    $region6: #{tpu_custom_call.1} parent=1 // pred_check
      _
    $region7: #{tpu_custom_call.1} parent=1 // pred_check_branch
      %26 = sbr.rel (0) target = $region9
    $region8: #{tpu_custom_call.1} parent=1 // pred_region
      %s28 = ssub.s32 256, 256
      %29 = vsyncadd [#allocation7], %s28
      %s30 = sshll.u32 [#allocation6], 4
      %s31 = int_to_ptr.vmem [resolvable:$true] %s30
      %36 = dma.hbm_to_vmem [thread:$0]  %s1, 256, %s31, [#allocation7], 128, 128, 8
    $region9: #{tpu_custom_call.1} parent=1 // pred_fallthru
      _
    // Predicated region
    $region10: #{tpu_custom_call.1} parent=1 // pred_check
      _
    $region11: #{tpu_custom_call.1} parent=1 // pred_check_branch
      %38 = sbr.rel (0) target = $region13
    $region12: #{tpu_custom_call.1} parent=1 // pred_region
      _
    $region13: #{tpu_custom_call.1} parent=1 // pred_fallthru
      _
    // Predicated region
    $region14: #{tpu_custom_call.1} parent=1 // pred_check
      _
    $region15: #{tpu_custom_call.1} parent=1 // pred_check_branch
      %40 = sbr.rel (0) target = $region17
    $region16: #{tpu_custom_call.1} parent=1 // pred_region
      _
    $region17: #{tpu_custom_call.1} parent=1 // pred_fallthru
      _
    // Predicated region
    $region18: #{tpu_custom_call.1} parent=1 // pred_check
      _
    $region19: #{tpu_custom_call.1} parent=1 // pred_check_branch
      %42 = sbr.rel (0) target = $region21
    $region20: #{tpu_custom_call.1} parent=1 // pred_region
      _
    $region21: #{tpu_custom_call.1} parent=1 // pred_fallthru
      _
    // Predicated region
    $region22: #{tpu_custom_call.1} parent=1 // pred_check
      _
    $region23: #{tpu_custom_call.1} parent=1 // pred_check_branch
      %44 = sbr.rel (0) target = $region25
    $region24: #{tpu_custom_call.1} parent=1 // pred_region
      %45 = dma.done [#allocation4], 128
    $region25: #{tpu_custom_call.1} parent=1 // pred_fallthru
      _
    // Predicated region
    $region26: #{tpu_custom_call.1} parent=1 // pred_check
      _
    $region27: #{tpu_custom_call.1} parent=1 // pred_check_branch
      %47 = sbr.rel (0) target = $region29
    $region28: #{tpu_custom_call.1} parent=1 // pred_region
      %48 = dma.done [#allocation7], 256
    $region29: #{tpu_custom_call.1} parent=1 // pred_fallthru
      _
    %v49 = vld [vmem:[#allocation3] sm:$0xff]
    %v50 = vld [vmem:[#allocation6] sm:$0xff]
    %v51 = vld [vmem:[#allocation6 + $0x8] sm:$0xff]
    %v52 = vld [vmem:[%s2] sm:$0x1]
    %v54 = vlaneseq
    %v55 = vshrl.u32 %v54, 7
    %v56 = vsub.s32 0, %v55
    %v57 = vrot.slane %v52, %v56
    %vm59 = vcmask 130048
    %v61 = vsel %vm59, %v49, 0
    %63 = vmatprep.subr.mxu0 0.0
    %64 = vmatpush1.msra.mxu0 %v50
    %65 = vmatprep.subr.mxu0 0.0
    %66 = vmatpush1.msra.mxu0 %v51
    %67 = vmatprep.subr.mxu0 0.0
    %68 = vmatpush1.msra.mxu0 0.0
    %69 = vmatprep.subr.mxu0 0.0
    %70 = vmatpush1.msra.mxu0 0.0
    %71 = vmatprep.subr.mxu0 0.0
    %72 = vmatpush1.msra.mxu0 0.0
    %73 = vmatprep.subr.mxu0 0.0
    %74 = vmatpush1.msra.mxu0 0.0
    %75 = vmatprep.subr.mxu0 0.0
    %76 = vmatpush1.msra.mxu0 0.0
    %77 = vmatprep.subr.mxu0 0.0
    %78 = vmatpush1.msra.mxu0 0.0
    %79 = vmatprep.subr.mxu0 0.0
    %80 = vmatpush1.msra.mxu0 0.0
    %81 = vmatprep.subr.mxu0 0.0
    %82 = vmatpush1.msra.mxu0 0.0
    %83 = vmatprep.subr.mxu0 0.0
    %84 = vmatpush1.msra.mxu0 0.0
    %85 = vmatprep.subr.mxu0 0.0
    %86 = vmatpush1.msra.mxu0 0.0
    %87 = vmatprep.subr.mxu0 0.0
    %88 = vmatpush1.msra.mxu0 0.0
    %89 = vmatprep.subr.mxu0 0.0
    %90 = vmatpush1.msra.mxu0 0.0
    %91 = vmatprep.subr.mxu0 0.0
    %92 = vmatpush1.msra.mxu0 0.0
    %93 = vmatprep.subr.mxu0 0.0
    %94 = vmatpush1.msra.mxu0 0.0
    %95 = vmatprep.subr.mxu0 0.0
    %96 = vmatpush1.msra.mxu0 0.0
    %97 = vmatprep.subr.mxu0 0.0
    %98 = vmatpush1.msra.mxu0 0.0
    %99 = vmatprep.subr.mxu0 0.0
    %100 = vmatpush1.msra.mxu0 0.0
    %101 = vmatprep.subr.mxu0 0.0
    %102 = vmatpush1.msra.mxu0 0.0
    %103 = vmatprep.subr.mxu0 0.0
    %104 = vmatpush1.msra.mxu0 0.0
    %105 = vmatprep.subr.mxu0 0.0
    %106 = vmatpush1.msra.mxu0 0.0
    %107 = vmatprep.subr.mxu0 0.0
    %108 = vmatpush1.msra.mxu0 0.0
    %109 = vmatprep.subr.mxu0 0.0
    %110 = vmatpush1.msra.mxu0 0.0
    %111 = vmatprep.subr.mxu0 0.0
    %112 = vmatpush1.msra.mxu0 0.0
    %113 = vmatprep.subr.mxu0 0.0
    %114 = vmatpush1.msra.mxu0 0.0
    %115 = vmatprep.subr.mxu0 0.0
    %116 = vmatpush1.msra.mxu0 0.0
    %117 = vmatprep.subr.mxu0 0.0
    %118 = vmatpush1.msra.mxu0 0.0
    %119 = vmatprep.subr.mxu0 0.0
    %120 = vmatpush1.msra.mxu0 0.0
    %121 = vmatprep.subr.mxu0 0.0
    %122 = vmatpush1.msra.mxu0 0.0
    %123 = vmatprep.subr.mxu0 0.0
    %124 = vmatpush1.msra.mxu0 0.0
    %125 = vmatprep.subr.mxu0 0.0
    %126 = vmatpush1.msra.mxu0 0.0
    %127 = vmatprep.mubr.f32.mxu0 0.0
    %128 = vmatmul.mubr.f32.gmra.mrb[0].mxu0 %v61
    %v129 = vpop.f32.mrb[0].mxu0
    %v130 = vadd.f32 %v57, %v129
    %v131 = vpop.f32.mrb[0].mxu0
    %132 = vdwg.mxu0
    %v133 = vmax.f32 %v130, 0.0
    %v134 = vld [vmem:[%s3] sm:$0x1]
    %v135 = vld [vmem:[#allocation2] sm:$0x1]
    %137 = vset.pattern.permute.xlu0 0
    %138 = vperm.xlu0 %137, %v135
    %v139 = vpop.permute.xlu0 %138
    %v141 = vlaneseq
    %v142 = vshrl.u32 %v141, 7
    %v143 = vsub.s32 0, %v142
    %v144 = vrot.slane %v139, %v143
    %vm145 = vcmask 523264
    %v147 = vsel %vm145, %v134, 0
    %v150 = vsel %vm145, %v133, 0
    %152 = vmatprep.subr.mxu0 0.0
    %153 = vmatpush1.xpose.msra.mxu0 %v150
    %154 = vmatprep.subr.mxu0 0.0
    %155 = vmatpush1.xpose.msra.mxu0 0.0
    %156 = vmatprep.subr.mxu0 0.0
    %157 = vmatpush1.xpose.msra.mxu0 0.0
    %158 = vmatprep.subr.mxu0 0.0
    %159 = vmatpush1.xpose.msra.mxu0 0.0
    %160 = vmatprep.subr.mxu0 0.0
    %161 = vmatpush1.xpose.msra.mxu0 0.0
    %162 = vmatprep.subr.mxu0 0.0
    %163 = vmatpush1.xpose.msra.mxu0 0.0
    %164 = vmatprep.subr.mxu0 0.0
    %165 = vmatpush1.xpose.msra.mxu0 0.0
    %166 = vmatprep.subr.mxu0 0.0
    %167 = vmatpush1.xpose.msra.mxu0 0.0
    %168 = vmatprep.subr.mxu0 0.0
    %169 = vmatpush1.xpose.msra.mxu0 0.0
    %170 = vmatprep.subr.mxu0 0.0
    %171 = vmatpush1.xpose.msra.mxu0 0.0
    %172 = vmatprep.subr.mxu0 0.0
    %173 = vmatpush1.xpose.msra.mxu0 0.0
    %174 = vmatprep.subr.mxu0 0.0
    %175 = vmatpush1.xpose.msra.mxu0 0.0
    %176 = vmatprep.subr.mxu0 0.0
    %177 = vmatpush1.xpose.msra.mxu0 0.0
    %178 = vmatprep.subr.mxu0 0.0
    %179 = vmatpush1.xpose.msra.mxu0 0.0
    %180 = vmatprep.subr.mxu0 0.0
    %181 = vmatpush1.xpose.msra.mxu0 0.0
    %182 = vmatprep.subr.mxu0 0.0
    %183 = vmatpush1.xpose.msra.mxu0 0.0
    %184 = vmatprep.subr.mxu0 0.0
    %185 = vmatpush1.xpose.msra.mxu0 0.0
    %186 = vmatprep.subr.mxu0 0.0
    %187 = vmatpush1.xpose.msra.mxu0 0.0
    %188 = vmatprep.subr.mxu0 0.0
    %189 = vmatpush1.xpose.msra.mxu0 0.0
    %190 = vmatprep.subr.mxu0 0.0
    %191 = vmatpush1.xpose.msra.mxu0 0.0
    %192 = vmatprep.subr.mxu0 0.0
    %193 = vmatpush1.xpose.msra.mxu0 0.0
    %194 = vmatprep.subr.mxu0 0.0
    %195 = vmatpush1.xpose.msra.mxu0 0.0
    %196 = vmatprep.subr.mxu0 0.0
    %197 = vmatpush1.xpose.msra.mxu0 0.0
    %198 = vmatprep.subr.mxu0 0.0
    %199 = vmatpush1.xpose.msra.mxu0 0.0
    %200 = vmatprep.subr.mxu0 0.0
    %201 = vmatpush1.xpose.msra.mxu0 0.0
    %202 = vmatprep.subr.mxu0 0.0
    %203 = vmatpush1.xpose.msra.mxu0 0.0
    %204 = vmatprep.subr.mxu0 0.0
    %205 = vmatpush1.xpose.msra.mxu0 0.0
    %206 = vmatprep.subr.mxu0 0.0
    %207 = vmatpush1.xpose.msra.mxu0 0.0
    %208 = vmatprep.subr.mxu0 0.0
    %209 = vmatpush1.xpose.msra.mxu0 0.0
    %210 = vmatprep.subr.mxu0 0.0
    %211 = vmatpush1.xpose.msra.mxu0 0.0
    %212 = vmatprep.subr.mxu0 0.0
    %213 = vmatpush1.xpose.msra.mxu0 0.0
    %214 = vmatprep.subr.mxu0 0.0
    %215 = vmatpush1.xpose.msra.mxu0 0.0
    %216 = vmatprep.mubr.f32.mxu0 0.0
    %217 = vmatmul.mubr.f32.gmra.mrb[0].mxu0 %v147
    %v218 = vpop.f32.mrb[0].mxu0
    %v219 = vadd.f32 %v144, %v218
    %v220 = vpop.f32.mrb[0].mxu0
    %221 = vdwg.mxu0
    %vm222 = vcmask 57344
    %223 = vst.msk [vmem:[#allocation8] sm:$0x1] %vm222, %v219
    // Predicated region
    $region30: #{tpu_custom_call.1} parent=1 // pred_check
      _
    $region31: #{tpu_custom_call.1} parent=1 // pred_check_branch
      %225 = sbr.rel (0) target = $region33
    $region32: #{tpu_custom_call.1} parent=1 // pred_region
      %s227 = ssub.s32 16, 16
      %228 = vsyncadd [#allocation5], %s227
      %s230 = sshll.u32 [#allocation8], 4
      %s231 = int_to_ptr.vmem [resolvable:$true] %s230
      %233 = dma.vmem_to_hbm [thread:$0]  %s231, 16, %s5, [#allocation5]
    $region33: #{tpu_custom_call.1} parent=1 // pred_fallthru
      _
    // Predicated region
    $region34: #{tpu_custom_call.1} parent=1 // pred_check
      _
    $region35: #{tpu_custom_call.1} parent=1 // pred_check_branch
      %235 = sbr.rel (0) target = $region37
    $region36: #{tpu_custom_call.1} parent=1 // pred_region
      %236 = dma.done [#allocation5], 16
    $region37: #{tpu_custom_call.1} parent=1 // pred_fallthru
      _
    %237 = vsyncpa [#allocation4], 1
    %238 = vsyncpa [#allocation7], 1
    %239 = vsyncpa [#allocation5], 1

</llo_original>
